<compile_context>
chip_gen: v5e
topology: v5e:2x2
jax: 0.10.0
libtpu: 0.0.40
codegen_flags: <defaults>
</compile_context>

<pallas_src>
import math

import jax
import jax.numpy as jnp
from jax.experimental import pallas as pl
from jax.experimental.pallas import tpu as pltpu

_LANES = 128
_MAX_BLOCK_ROWS = 2048   # (2048,128) f32 = 1 MiB / stream
_ROW_ALIGN = 32          # native sublane tile for the 8-bit bool outputs (also covers f32's 8)


def _elementwise_kernel(x_ref, add_ref, sub_ref, mul_ref, div_ref, gt_ref, lt_ref):
    x = x_ref[...]
    add_ref[...] = x + 2.0
    sub_ref[...] = x - 2.0
    mul_ref[...] = x * 2.0
    div_ref[...] = x * 0.5          # exact for float dtypes (division by 2)
    gt_ref[...] = x > 1.0
    lt_ref[...] = x < 1.0


def pt_module_forward(x):
    """Pallas equivalent of PtModule.forward (returns 6 tensors)."""
    orig_shape = x.shape
    dtype = x.dtype
    if not jnp.issubdtype(dtype, jnp.floating):
        # True division by 2 (PyTorch semantics) promotes ints to float; only
        # float inputs are supported here.
        raise TypeError("pt_module_forward supports floating dtypes only")
    total = math.prod(orig_shape)

    # Lane-dense 2D slab: last dim = 128 lanes. Pad only to a lane multiple.
    rows = -(-total // _LANES)                  # cdiv
    padded_total = rows * _LANES
    flat = x.reshape(-1)
    if padded_total != total:
        flat = jnp.pad(flat, (0, padded_total - total))
    x2d = flat.reshape(rows, _LANES)

    # Block selection: tiny inputs -> one full-extent block (always legal);
    # otherwise aim for >=8 blocks (megacore sharding / DMA overlap), aligned
    # to 32 sublanes, capped at _MAX_BLOCK_ROWS. Ragged last block is masked.
    if rows <= 2 * _ROW_ALIGN:
        block_rows = rows
    else:
        target = -(-rows // 8)
        block_rows = min(_MAX_BLOCK_ROWS, -(-target // _ROW_ALIGN) * _ROW_ALIGN)
    grid = (-(-rows // block_rows),)

    blk = (block_rows, _LANES)
    slab_f = jax.ShapeDtypeStruct((rows, _LANES), dtype)
    slab_b = jax.ShapeDtypeStruct((rows, _LANES), jnp.bool_)

    cost = pl.CostEstimate(
        flops=6 * total,            # add, sub, 2x mul, 2x compare per element
        transcendentals=0,
        bytes_accessed=22 * total,  # 4 B in + 16 B f32 out + 2 B bool out
    )

    outs = pl.pallas_call(
        _elementwise_kernel,
        out_shape=(slab_f, slab_f, slab_f, slab_f, slab_b, slab_b),
        grid=grid,
        in_specs=[pl.BlockSpec(blk, lambda i: (i, 0))],
        out_specs=tuple(pl.BlockSpec(blk, lambda i: (i, 0)) for _ in range(6)),
        compiler_params=pltpu.CompilerParams(dimension_semantics=("parallel",)),
        cost_estimate=cost,
    )(x2d)

    def unslab(a):
        if padded_total == total:
            return a.reshape(orig_shape)        # free bitcast in the common case
        return a.reshape(-1)[:total].reshape(orig_shape)

    return tuple(unslab(a) for a in outs)


if __name__ == "__main__":
    key = jax.random.PRNGKey(0)
    x = jax.random.normal(key, (2, 4, 16, 16), dtype=jnp.float32)

    outs = jax.block_until_ready(pt_module_forward(x))

    # Correctness check against plain JAX reference.
    refs = (x + 2, x - 2, x * 2, x / 2, x > 1, x < 1)
    for o, r in zip(outs, refs):
        assert o.shape == r.shape, (o.shape, r.shape)
        assert o.dtype == r.dtype, (o.dtype, r.dtype)
        if o.dtype == jnp.bool_:
            assert bool(jnp.array_equal(o, r))
        else:
            assert bool(jnp.allclose(o, r))

    print("KERNEL_OK")
</pallas_src>

<mosaic_0001>
module attributes {stable_mosaic.version = 11 : i64} {
  func.func @_elementwise_kernel(%arg0: i32, %arg1: memref<16x128xf32, #tpu.memory_space<vmem>>, %arg2: memref<16x128xf32, #tpu.memory_space<vmem>>, %arg3: memref<16x128xf32, #tpu.memory_space<vmem>>, %arg4: memref<16x128xf32, #tpu.memory_space<vmem>>, %arg5: memref<16x128xf32, #tpu.memory_space<vmem>>, %arg6: memref<16x128xi32, #tpu.memory_space<vmem>>, %arg7: memref<16x128xi32, #tpu.memory_space<vmem>>) attributes {dimension_semantics = [#tpu.dimension_semantics<parallel>], iteration_bounds = array<i64: 1>, scalar_prefetch = 0 : i64, scratch_operands = 0 : i64, tpu.core_type = #tpu.core_type<tc>, window_params = [{transform_indices = @transform_0, window_bounds = array<i64: 16, 128>}, {transform_indices = @transform_1, window_bounds = array<i64: 16, 128>}, {transform_indices = @transform_2, window_bounds = array<i64: 16, 128>}, {transform_indices = @transform_3, window_bounds = array<i64: 16, 128>}, {transform_indices = @transform_4, window_bounds = array<i64: 16, 128>}, {transform_indices = @transform_5, window_bounds = array<i64: 16, 128>}, {transform_indices = @transform_6, window_bounds = array<i64: 16, 128>}]} {
    %c0 = arith.constant 0 : index
    %c0_0 = arith.constant 0 : index
    %0 = vector.load %arg1[%c0, %c0_0] : memref<16x128xf32, #tpu.memory_space<vmem>>, vector<16x128xf32>
    %cst = arith.constant 2.000000e+00 : f32
    %1 = vector.broadcast %cst : f32 to vector<16x128xf32>
    %2 = arith.addf %0, %1 : vector<16x128xf32>
    %c0_1 = arith.constant 0 : index
    %c0_2 = arith.constant 0 : index
    %3 = vector.load %arg2[%c0_1, %c0_2] : memref<16x128xf32, #tpu.memory_space<vmem>>, vector<16x128xf32>
    tpu.vector_store %arg2[%c0_1, %c0_2], %2 {strides = array<i32>} : memref<16x128xf32, #tpu.memory_space<vmem>>, vector<16x128xf32>,
    %cst_3 = arith.constant 2.000000e+00 : f32
    %4 = vector.broadcast %cst_3 : f32 to vector<16x128xf32>
    %5 = arith.subf %0, %4 : vector<16x128xf32>
    %c0_4 = arith.constant 0 : index
    %c0_5 = arith.constant 0 : index
    %6 = vector.load %arg3[%c0_4, %c0_5] : memref<16x128xf32, #tpu.memory_space<vmem>>, vector<16x128xf32>
    tpu.vector_store %arg3[%c0_4, %c0_5], %5 {strides = array<i32>} : memref<16x128xf32, #tpu.memory_space<vmem>>, vector<16x128xf32>,
    %cst_6 = arith.constant 2.000000e+00 : f32
    %7 = vector.broadcast %cst_6 : f32 to vector<16x128xf32>
    %8 = arith.mulf %0, %7 : vector<16x128xf32>
    %c0_7 = arith.constant 0 : index
    %c0_8 = arith.constant 0 : index
    %9 = vector.load %arg4[%c0_7, %c0_8] : memref<16x128xf32, #tpu.memory_space<vmem>>, vector<16x128xf32>
    tpu.vector_store %arg4[%c0_7, %c0_8], %8 {strides = array<i32>} : memref<16x128xf32, #tpu.memory_space<vmem>>, vector<16x128xf32>,
    %cst_9 = arith.constant 5.000000e-01 : f32
    %10 = vector.broadcast %cst_9 : f32 to vector<16x128xf32>
    %11 = arith.mulf %0, %10 : vector<16x128xf32>
    %c0_10 = arith.constant 0 : index
    %c0_11 = arith.constant 0 : index
    %12 = vector.load %arg5[%c0_10, %c0_11] : memref<16x128xf32, #tpu.memory_space<vmem>>, vector<16x128xf32>
    tpu.vector_store %arg5[%c0_10, %c0_11], %11 {strides = array<i32>} : memref<16x128xf32, #tpu.memory_space<vmem>>, vector<16x128xf32>,
    %cst_12 = arith.constant 1.000000e+00 : f32
    %13 = vector.broadcast %cst_12 : f32 to vector<16x128xf32>
    %14 = arith.cmpf ogt, %0, %13 : vector<16x128xf32>
    %c0_13 = arith.constant 0 : index
    %c0_14 = arith.constant 0 : index
    %15 = vector.load %arg6[%c0_13, %c0_14] : memref<16x128xi32, #tpu.memory_space<vmem>>, vector<16x128xi32>
    %16 = arith.extui %14 : vector<16x128xi1> to vector<16x128xi32>
    %cst_15 = arith.constant dense<0> : vector<16x128xi32>
    %17 = arith.cmpi ne, %15, %cst_15 : vector<16x128xi32>
    tpu.vector_store %arg6[%c0_13, %c0_14], %16 {strides = array<i32>} : memref<16x128xi32, #tpu.memory_space<vmem>>, vector<16x128xi32>,
    %cst_16 = arith.constant 1.000000e+00 : f32
    %18 = vector.broadcast %cst_16 : f32 to vector<16x128xf32>
    %19 = arith.cmpf olt, %0, %18 : vector<16x128xf32>
    %c0_17 = arith.constant 0 : index
    %c0_18 = arith.constant 0 : index
    %20 = vector.load %arg7[%c0_17, %c0_18] : memref<16x128xi32, #tpu.memory_space<vmem>>, vector<16x128xi32>
    %21 = arith.extui %19 : vector<16x128xi1> to vector<16x128xi32>
    %cst_19 = arith.constant dense<0> : vector<16x128xi32>
    %22 = arith.cmpi ne, %20, %cst_19 : vector<16x128xi32>
    tpu.vector_store %arg7[%c0_17, %c0_18], %21 {strides = array<i32>} : memref<16x128xi32, #tpu.memory_space<vmem>>, vector<16x128xi32>,
    return
  }
  func.func @transform_0(%arg0: i32) -> (i32, i32) {
    %c0_i32 = arith.constant 0 : i32
    %c0_i32_0 = arith.constant 0 : i32
    return %arg0, %c0_i32 : i32, i32
  }
  func.func @transform_1(%arg0: i32) -> (i32, i32) {
    %c0_i32 = arith.constant 0 : i32
    %c0_i32_0 = arith.constant 0 : i32
    return %arg0, %c0_i32 : i32, i32
  }
  func.func @transform_2(%arg0: i32) -> (i32, i32) {
    %c0_i32 = arith.constant 0 : i32
    %c0_i32_0 = arith.constant 0 : i32
    return %arg0, %c0_i32 : i32, i32
  }
  func.func @transform_3(%arg0: i32) -> (i32, i32) {
    %c0_i32 = arith.constant 0 : i32
    %c0_i32_0 = arith.constant 0 : i32
    return %arg0, %c0_i32 : i32, i32
  }
  func.func @transform_4(%arg0: i32) -> (i32, i32) {
    %c0_i32 = arith.constant 0 : i32
    %c0_i32_0 = arith.constant 0 : i32
    return %arg0, %c0_i32 : i32, i32
  }
  func.func @transform_5(%arg0: i32) -> (i32, i32) {
    %c0_i32 = arith.constant 0 : i32
    %c0_i32_0 = arith.constant 0 : i32
    return %arg0, %c0_i32 : i32, i32
  }
  func.func @transform_6(%arg0: i32) -> (i32, i32) {
    %c0_i32 = arith.constant 0 : i32
    %c0_i32_0 = arith.constant 0 : i32
    return %arg0, %c0_i32 : i32, i32
  }
}

</mosaic_0001>

<llo_original>
// kernel: tpu_custom_call.1
$region0: #{tpu_custom_call.1}
  #allocation0 [shape = 'u32[]', space=smem, size = 0x4, offset = 0x4, fixed_abs, tag = 'smem constant byte address 0x4 - core index']
  #allocation1 [shape = 'u32[72,128]{1,0:T(1,128)}', space=vmem, size = 0x9000, scoped, tag = 'internal scratch']
  %s0 = inlined_call_operand.hbm [shape: f32[16,128], index: 0, kind: input, shape index: {}]
  %s1 = inlined_call_operand.hbm [shape: f32[16,128], index: 1, kind: output, shape index: {0}]
  %s2 = inlined_call_operand.hbm [shape: f32[16,128], index: 2, kind: output, shape index: {1}]
  %s3 = inlined_call_operand.hbm [shape: f32[16,128], index: 3, kind: output, shape index: {2}]
  %s4 = inlined_call_operand.hbm [shape: f32[16,128], index: 4, kind: output, shape index: {3}]
  %s5 = inlined_call_operand.vmem [shape: s32[16,128], index: 5, kind: output, shape index: {4}]
  %s6 = inlined_call_operand.vmem [shape: s32[16,128], index: 6, kind: output, shape index: {5}]
  %7 = xla_tuple %s1, %s2, %s3, %s4, %s5, %s6
  %s8 = sld [smem:[#allocation0]]
  $region58: #{tpu_custom_call.1} parent=0
    _
  %s10 = ssub.s32 1, %s8
  %s11 = scalar_select 0, %s10, %s8
  $region1: #{tpu_custom_call.1} parent=0
    #allocation2 [shape = 'u8[8192]{0}', space=vmem, size = 0x2000, scoped, tag = 'input window, operand 0, single buffered']
    #allocation3 [shape = 's32[1]{0}', space=sflag, size = 0x4, scoped, tag = 'scoped memory for tpu_custom_call.1']
    #allocation4 [shape = 's32[1]{0}', space=sflag, size = 0x4, scoped, tag = 'scoped memory for tpu_custom_call.1']
    #allocation5 [shape = 'u8[8192]{0}', space=vmem, size = 0x2000, scoped, tag = 'output window, operand 0, single buffered']
    #allocation6 [shape = 'u8[8192]{0}', space=vmem, size = 0x2000, scoped, tag = 'output window, operand 1, single buffered']
    #allocation7 [shape = 's32[1]{0}', space=sflag, size = 0x4, scoped, tag = 'scoped memory for tpu_custom_call.1']
    #allocation8 [shape = 'u8[8192]{0}', space=vmem, size = 0x2000, scoped, tag = 'output window, operand 2, single buffered']
    #allocation9 [shape = 'u8[8192]{0}', space=vmem, size = 0x2000, scoped, tag = 'output window, operand 3, single buffered']
    #allocation10 [shape = 's32[1]{0}', space=sflag, size = 0x4, scoped, tag = 'scoped memory for tpu_custom_call.1']
    %12 = vsyncpa [#allocation3], 0
    %13 = vsyncpa [#allocation4], 0
    %14 = vsyncpa [#allocation7], 0
    %15 = vsyncpa [#allocation10], 0
    // Predicated region
    $region2: #{tpu_custom_call.1} parent=1 // pred_check
      _
    $region3: #{tpu_custom_call.1} parent=1 // pred_check_branch
      %17 = sbr.rel (0) target = $region5
    $region4: #{tpu_custom_call.1} parent=1 // pred_region
      %19 = vsyncadd [#allocation3], 0
      %s20 = sshll.u32 %s0, 4
      %s21 = int_to_ptr.hbm [resolvable:$true] %s20
      %s22 = sshll.u32 [#allocation2], 4
      %s23 = int_to_ptr.vmem [resolvable:$true] %s22
      %28 = dma.hbm_to_vmem [thread:$0]  %s21, 256, %s23, [#allocation3], 128, 128, 8
    $region5: #{tpu_custom_call.1} parent=1 // pred_fallthru
      _
    // Predicated region
    $region6: #{tpu_custom_call.1} parent=1 // pred_check
      _
    $region7: #{tpu_custom_call.1} parent=1 // pred_check_branch
      %30 = sbr.rel (0) target = $region9
    $region8: #{tpu_custom_call.1} parent=1 // pred_region
      %32 = dma.done [#allocation3], 256
    $region9: #{tpu_custom_call.1} parent=1 // pred_fallthru
      _
    %v33 = vld [vmem:[#allocation2] sm:$0xff]
    %v34 = vld [vmem:[#allocation2 + $0x8] sm:$0xff]
    %v35 = vadd.f32 %v33, 2.0
    %v36 = vadd.f32 %v34, 2.0
    %37 = vst [vmem:[#allocation5] sm:$0xff] %v35
    %38 = vst [vmem:[#allocation5 + $0x8] sm:$0xff] %v36
    %v39 = vsub.f32 %v33, 2.0
    %v40 = vsub.f32 %v34, 2.0
    %41 = vst [vmem:[#allocation6] sm:$0xff] %v39
    %42 = vst [vmem:[#allocation6 + $0x8] sm:$0xff] %v40
    %v43 = vmul.f32 %v33, 2.0
    %v44 = vmul.f32 %v34, 2.0
    %45 = vst [vmem:[#allocation8] sm:$0xff] %v43
    %46 = vst [vmem:[#allocation8 + $0x8] sm:$0xff] %v44
    %v47 = vmul.f32 %v33, 0.5
    %v48 = vmul.f32 %v34, 0.5
    %49 = vst [vmem:[#allocation9] sm:$0xff] %v47
    %50 = vst [vmem:[#allocation9 + $0x8] sm:$0xff] %v48
    %vm51 = vcmp.gt.f32.partialorder %v33, 1.0
    %vm52 = vcmp.gt.f32.partialorder %v34, 1.0
    %v53 = vsel %vm51, 1, 0
    %v54 = vsel %vm52, 1, 0
    %55 = vst [vmem:[%s5] sm:$0xff] %v53
    %56 = vst [vmem:[%s5 + $0x8] sm:$0xff] %v54
    %vm57 = vcmp.lt.f32.partialorder %v33, 1.0
    %vm58 = vcmp.lt.f32.partialorder %v34, 1.0
    %v59 = vsel %vm57, 1, 0
    %v60 = vsel %vm58, 1, 0
    %61 = vst [vmem:[%s6] sm:$0xff] %v59
    %62 = vst [vmem:[%s6 + $0x8] sm:$0xff] %v60
    // Predicated region
    $region10: #{tpu_custom_call.1} parent=1 // pred_check
      _
    $region11: #{tpu_custom_call.1} parent=1 // pred_check_branch
      %64 = sbr.rel (0) target = $region13
    $region12: #{tpu_custom_call.1} parent=1 // pred_region
      %66 = vsyncadd [#allocation4], 0
      %s67 = sshll.u32 [#allocation5], 4
      %s68 = int_to_ptr.vmem [resolvable:$true] %s67
      %s69 = sshll.u32 %s1, 4
      %s70 = int_to_ptr.hbm [resolvable:$true] %s69
      %75 = dma.vmem_to_hbm [thread:$0]  %s68, 256, %s70, [#allocation4], 128, 128, 8
    $region13: #{tpu_custom_call.1} parent=1 // pred_fallthru
      _
    // Predicated region
    $region14: #{tpu_custom_call.1} parent=1 // pred_check
      _
    $region15: #{tpu_custom_call.1} parent=1 // pred_check_branch
      %77 = sbr.rel (0) target = $region17
    $region16: #{tpu_custom_call.1} parent=1 // pred_region
      %79 = vsyncadd [#allocation7], 0
      %s80 = sshll.u32 [#allocation6], 4
      %s81 = int_to_ptr.vmem [resolvable:$true] %s80
      %s82 = sshll.u32 %s2, 4
      %s83 = int_to_ptr.hbm [resolvable:$true] %s82
      %88 = dma.vmem_to_hbm [thread:$0]  %s81, 256, %s83, [#allocation7], 128, 128, 8
    $region17: #{tpu_custom_call.1} parent=1 // pred_fallthru
      _
    // Predicated region
    $region18: #{tpu_custom_call.1} parent=1 // pred_check
      _
    $region19: #{tpu_custom_call.1} parent=1 // pred_check_branch
      %90 = sbr.rel (0) target = $region21
    $region20: #{tpu_custom_call.1} parent=1 // pred_region
      %92 = vsyncadd [#allocation7], 0
      %s93 = sshll.u32 [#allocation8], 4
      %s94 = int_to_ptr.vmem [resolvable:$true] %s93
      %s95 = sshll.u32 %s3, 4
      %s96 = int_to_ptr.hbm [resolvable:$true] %s95
      %101 = dma.vmem_to_hbm [thread:$0]  %s94, 256, %s96, [#allocation7], 128, 128, 8
    $region21: #{tpu_custom_call.1} parent=1 // pred_fallthru
      _
    // Predicated region
    $region22: #{tpu_custom_call.1} parent=1 // pred_check
      _
    $region23: #{tpu_custom_call.1} parent=1 // pred_check_branch
      %103 = sbr.rel (0) target = $region25
    $region24: #{tpu_custom_call.1} parent=1 // pred_region
      %105 = vsyncadd [#allocation10], 0
      %s106 = sshll.u32 [#allocation9], 4
      %s107 = int_to_ptr.vmem [resolvable:$true] %s106
      %s108 = sshll.u32 %s4, 4
      %s109 = int_to_ptr.hbm [resolvable:$true] %s108
      %114 = dma.vmem_to_hbm [thread:$0]  %s107, 256, %s109, [#allocation10], 128, 128, 8
    $region25: #{tpu_custom_call.1} parent=1 // pred_fallthru
      _
    // Predicated region
    $region26: #{tpu_custom_call.1} parent=1 // pred_check
      _
    $region27: #{tpu_custom_call.1} parent=1 // pred_check_branch
      %116 = sbr.rel (0) target = $region29
    $region28: #{tpu_custom_call.1} parent=1 // pred_region
      _
    $region29: #{tpu_custom_call.1} parent=1 // pred_fallthru
      _
    // Predicated region
    $region30: #{tpu_custom_call.1} parent=1 // pred_check
      _
    $region31: #{tpu_custom_call.1} parent=1 // pred_check_branch
      %118 = sbr.rel (0) target = $region33
    $region32: #{tpu_custom_call.1} parent=1 // pred_region
      _
    $region33: #{tpu_custom_call.1} parent=1 // pred_fallthru
      _
    // Predicated region
    $region34: #{tpu_custom_call.1} parent=1 // pred_check
      _
    $region35: #{tpu_custom_call.1} parent=1 // pred_check_branch
      %120 = sbr.rel (0) target = $region37
    $region36: #{tpu_custom_call.1} parent=1 // pred_region
      %122 = dma.done [#allocation4], 256
    $region37: #{tpu_custom_call.1} parent=1 // pred_fallthru
      _
    // Predicated region
    $region38: #{tpu_custom_call.1} parent=1 // pred_check
      _
    $region39: #{tpu_custom_call.1} parent=1 // pred_check_branch
      %124 = sbr.rel (0) target = $region41
    $region40: #{tpu_custom_call.1} parent=1 // pred_region
      %126 = dma.done [#allocation7], 256
    $region41: #{tpu_custom_call.1} parent=1 // pred_fallthru
      _
    // Predicated region
    $region42: #{tpu_custom_call.1} parent=1 // pred_check
      _
    $region43: #{tpu_custom_call.1} parent=1 // pred_check_branch
      %128 = sbr.rel (0) target = $region45
    $region44: #{tpu_custom_call.1} parent=1 // pred_region
      %130 = dma.done [#allocation7], 256
    $region45: #{tpu_custom_call.1} parent=1 // pred_fallthru
      _
    // Predicated region
    $region46: #{tpu_custom_call.1} parent=1 // pred_check
      _
    $region47: #{tpu_custom_call.1} parent=1 // pred_check_branch
      %132 = sbr.rel (0) target = $region49
    $region48: #{tpu_custom_call.1} parent=1 // pred_region
      %134 = dma.done [#allocation10], 256
    $region49: #{tpu_custom_call.1} parent=1 // pred_fallthru
      _
    // Predicated region
    $region50: #{tpu_custom_call.1} parent=1 // pred_check
      _
    $region51: #{tpu_custom_call.1} parent=1 // pred_check_branch
      %136 = sbr.rel (0) target = $region53
    $region52: #{tpu_custom_call.1} parent=1 // pred_region
      _
    $region53: #{tpu_custom_call.1} parent=1 // pred_fallthru
      _
    // Predicated region
    $region54: #{tpu_custom_call.1} parent=1 // pred_check
      _
    $region55: #{tpu_custom_call.1} parent=1 // pred_check_branch
      %138 = sbr.rel (0) target = $region57
    $region56: #{tpu_custom_call.1} parent=1 // pred_region
      _
    $region57: #{tpu_custom_call.1} parent=1 // pred_fallthru
      _
    %139 = vsyncpa [#allocation3], 1
    %140 = vsyncpa [#allocation4], 1
    %141 = vsyncpa [#allocation7], 1
    %142 = vsyncpa [#allocation10], 1

</llo_original>
